<compile_context>
chip_gen: v7x
topology: tpu7x:2x2x1
jax: 0.10.0
libtpu: 0.0.40
codegen_flags: <defaults>
</compile_context>

<pallas_src>
import functools

import jax
import jax.numpy as jnp
from jax import lax
from jax.experimental import pallas as pl
from jax.experimental.pallas import tpu as pltpu

_INV_SQRT2 = 0.7071067811865476
_SQRT_2_OVER_PI = 0.7978845608028654


def _gelu_exact(x):
    # Matches torch.nn.GELU() default (approximate='none'): 0.5*x*(1+erf(x/sqrt(2)))
    return 0.5 * x * (1.0 + lax.erf(x * _INV_SQRT2))


def _gelu_tanh(x):
    # tanh approximation -> EUP slot (used only on the bf16 fast path).
    return 0.5 * x * (1.0 + jnp.tanh(_SQRT_2_OVER_PI * (x + 0.044715 * x * x * x)))


def _round_up(n, m):
    return (n + m - 1) // m * m


def mlp_kernel(x_ref, gamma_ref, beta_ref,
               w1_ref, b1_ref, w2_ref, b2_ref, w3_ref, b3_ref,
               x1_ref, x2_ref, *,
               d_in, seq_len, tile_s, needs_row_mask, fast):
    s_idx = pl.program_id(1)
    n_s = pl.num_programs(1)

    Bb, Ts, Dp = x_ref.shape
    # Fold (tile_b, tile_s) into one M dimension for the MXU.
    x = x_ref[...].astype(jnp.float32).reshape(Bb * Ts, Dp)

    # --- LayerNorm (fp32 stats), one pass over the zero-padded lanes ---
    # Padded lanes of x are exactly zero, so they contribute nothing to either sum.
    inv_d = 1.0 / d_in
    mu = jnp.sum(x, axis=-1, keepdims=True) * inv_d
    ex2 = jnp.sum(x * x, axis=-1, keepdims=True) * inv_d
    var = jnp.maximum(ex2 - mu * mu, 0.0)         # clamp guards fp32 cancellation
    h = (x - mu) * lax.rsqrt(var + 1e-5) * gamma_ref[...] + beta_ref[...]
    # gamma/beta padding is zero -> padded lanes of h remain exactly zero.

    gelu = _gelu_tanh if fast else _gelu_exact
    md = jnp.bfloat16 if fast else jnp.float32    # matmul operand dtype

    # --- fc1 + GELU ---
    h1 = jnp.dot(h.astype(md), w1_ref[...], preferred_element_type=jnp.float32) + b1_ref[...]
    h1 = gelu(h1)
    # --- fc2 ---
    h2 = jnp.dot(h1.astype(md), w2_ref[...], preferred_element_type=jnp.float32) + b2_ref[...]
    # --- branch: x2 = fc3(gelu(fc2_out)) ---
    g = gelu(h2)
    x2 = jnp.dot(g.astype(md), w3_ref[...], preferred_element_type=jnp.float32) + b3_ref[...]
    x2_ref[...] = x2.reshape(Bb, Ts, x2_ref.shape[2]).astype(x2_ref.dtype)

    # --- residual add (fp32), then accumulate the per-batch sequence sum for x1 ---
    xr = (h2 + x).reshape(Bb, Ts, Dp)

    @pl.when(s_idx == 0)
    def _():
        x1_ref[...] = jnp.zeros_like(x1_ref)

    if needs_row_mask:
        # Only the last S tile contains padded rows; keep the iota/select off the
        # VALU on every other step.
        is_last = s_idx == n_s - 1

        @pl.when(is_last)
        def _():
            row = s_idx * tile_s + lax.broadcasted_iota(jnp.int32, (1, Ts, 1), 1)
            x1_ref[...] += jnp.sum(jnp.where(row < seq_len, xr, 0.0),
                                   axis=1, keepdims=True)

        @pl.when(jnp.logical_not(is_last))
        def _():
            x1_ref[...] += jnp.sum(xr, axis=1, keepdims=True)
    else:
        x1_ref[...] += jnp.sum(xr, axis=1, keepdims=True)

    @pl.when(s_idx == n_s - 1)
    def _():
        x1_ref[...] = x1_ref[...] * (1.0 / seq_len)


def mlp_forward(x, gamma, beta, w1, b1, w2, b2, w3, b3, *, precise=True):
    B, S, D_in = x.shape
    H = w1.shape[1]
    D_out = w2.shape[1]
    D1 = w3.shape[1]
    assert D_out == D_in, "use_residual=True requires in_dim == out_dim"

    f32 = jnp.float32
    fast = not precise
    md = jnp.bfloat16 if fast else f32            # x-slab / weight dtype

    # Lane-dense padding of every feature dimension.
    Dp_in = _round_up(D_in, 128)
    Hp = _round_up(H, 128)
    Dp_out = _round_up(D_out, 128)
    Dp1 = _round_up(D1, 128)

    # Batch tiling: split B in two when possible so v7x can shard the 'parallel' axis
    # across both TensorCores (harmless on v5e/v6e's single core).
    if B >= 2 and B % 2 == 0:
        tile_b = B // 2
    else:
        tile_b = 1 if B > 1 else B
    n_b = B // tile_b

    # --- per-generation VMEM budget -------------------------------------------------
    try:
        vmem_cap = int(pltpu.get_tpu_info().vmem_capacity_bytes)
    except Exception:
        vmem_cap = 64 * 1024 * 1024               # conservative (v7x) fallback
    budget = min(int(vmem_cap * 3 // 4), 112 * 1024 * 1024)   # 48 MiB v7x, 96 MiB v5e/v6e

    wb = 2 if fast else 4                         # bytes per weight element
    xb = 2 if fast else 4                         # bytes per x-slab element
    weight_bytes = (wb * (Dp_in * Hp + Hp * Dp_out + Dp_out * Dp1)
                    + 4 * (2 * Dp_in + Hp + Dp_out + Dp1))
    if weight_bytes > budget // 3:
        # TODO(synk): K/N-tiled weight pipeline for weights that don't fit whole in VMEM.
        raise NotImplementedError(
            f"padded weights ({weight_bytes} B) exceed 1/3 of the VMEM budget ({budget} B)")

    # Byte-budget S tiling: double-buffered x / x2 slabs + fp32 intermediates per row.
    sub = 16 if fast else 8                       # sublane packing for the x-slab dtype
    per_row = tile_b * (2 * xb * Dp_in            # x slab (double-buffered)
                        + 2 * 4 * Dp1             # x2 slab (double-buffered, fp32)
                        + 4 * (Dp_in + Hp + 2 * Dp_out))   # fp32 intermediates
    avail = budget - weight_bytes - 4 * tile_b * Dp_in
    S8 = _round_up(S, sub)
    tile_s = max(sub, min(S8, (avail // per_row) // sub * sub))
    S_pad = _round_up(S, tile_s)
    n_s = S_pad // tile_s

    def pad2(a, r, c, dtype):
        a = a.astype(dtype)
        if a.shape == (r, c):
            return a
        return jnp.pad(a, ((0, r - a.shape[0]), (0, c - a.shape[1])))

    xp = x.astype(md)
    if S_pad != S or Dp_in != D_in:               # skip the pad pass when aligned
        xp = jnp.pad(xp, ((0, 0), (0, S_pad - S), (0, Dp_in - D_in)))
    gp = pad2(gamma, 1, Dp_in, f32)
    bp = pad2(beta, 1, Dp_in, f32)
    w1p = pad2(w1, Dp_in, Hp, md)
    b1p = pad2(b1, 1, Hp, f32)
    w2p = pad2(w2, Hp, Dp_out, md)
    b2p = pad2(b2, 1, Dp_out, f32)
    w3p = pad2(w3, Dp_out, Dp1, md)
    b3p = pad2(b3, 1, Dp1, f32)

    kernel = functools.partial(
        mlp_kernel,
        d_in=D_in, seq_len=S, tile_s=tile_s,
        needs_row_mask=(S_pad != S), fast=fast,
    )

    # Whole-array VMEM-resident operands: DMA'd once, not pipelined/double-buffered.
    vmem_whole = pl.BlockSpec(memory_space=pltpu.MemorySpace.VMEM)

    # Cost estimate with padded dims (true HBM traffic incl. x2 lane padding).
    M_total = B * S_pad
    flops = 2 * M_total * (Dp_in * Hp + Hp * Dp_out + Dp_out * Dp1)
    transcendentals = M_total * (Hp + Dp_out)
    bytes_accessed = (xb * B * S_pad * Dp_in
                      + wb * (Dp_in * Hp + Hp * Dp_out + Dp_out * Dp1)
                      + 4 * (B * S_pad * Dp1 + B * Dp_in))

    x1p, x2p = pl.pallas_call(
        kernel,
        out_shape=(
            jax.ShapeDtypeStruct((B, 1, Dp_in), f32),
            jax.ShapeDtypeStruct((B, S_pad, Dp1), f32),
        ),
        grid_spec=pltpu.PrefetchScalarGridSpec(
            num_scalar_prefetch=0,
            grid=(n_b, n_s),
            in_specs=[
                pl.BlockSpec((tile_b, tile_s, Dp_in), lambda b, s: (b, s, 0)),  # x slab
                vmem_whole, vmem_whole,      # gamma, beta
                vmem_whole, vmem_whole,      # fc1 W, b
                vmem_whole, vmem_whole,      # fc2 W, b
                vmem_whole, vmem_whole,      # fc3 W, b
            ],
            out_specs=[
                pl.BlockSpec((tile_b, 1, Dp_in), lambda b, s: (b, 0, 0)),       # x1 acc
                pl.BlockSpec((tile_b, tile_s, Dp1), lambda b, s: (b, s, 0)),    # x2 slab
            ],
        ),
        compiler_params=pltpu.CompilerParams(
            dimension_semantics=("parallel", "arbitrary"),   # B sharded; S accumulates
            vmem_limit_bytes=budget,
        ),
        cost_estimate=pl.CostEstimate(
            flops=flops,
            transcendentals=transcendentals,
            bytes_accessed=bytes_accessed,
        ),
    )(xp, gp, bp, w1p, b1p, w2p, b2p, w3p, b3p)

    x1 = x1p[:, 0, :D_in]
    x2 = x2p if (S_pad == S and Dp1 == D1) else x2p[:, :S, :D1]
    return x1, x2


def _reference(x, gamma, beta, w1, b1, w2, b2, w3, b3):
    mu = jnp.mean(x, axis=-1, keepdims=True)
    var = jnp.mean((x - mu) ** 2, axis=-1, keepdims=True)
    h = (x - mu) / jnp.sqrt(var + 1e-5) * gamma[0] + beta[0]
    h = _gelu_exact(h @ w1 + b1[0])
    h = h @ w2 + b2[0]
    x2 = _gelu_exact(h) @ w3 + b3[0]
    xr = h + x
    return jnp.mean(xr, axis=1), x2


if __name__ == "__main__":
    # Small shapes consistent with the module: use_residual=True  =>  in_dim == out_dim
    B, S = 2, 8
    in_dim, hidden_dim, out_dim, out_dim1 = 32, 64, 32, 16

    key = jax.random.PRNGKey(0)
    kx, k1, k2, k3, kb1, kb2, kb3 = jax.random.split(key, 7)

    x = jax.random.normal(kx, (B, S, in_dim), dtype=jnp.float32)

    gamma = jnp.ones((1, in_dim), dtype=jnp.float32)
    beta = jnp.zeros((1, in_dim), dtype=jnp.float32)
    w1 = 0.05 * jax.random.normal(k1, (in_dim, hidden_dim), dtype=jnp.float32)
    b1 = 0.01 * jax.random.normal(kb1, (1, hidden_dim), dtype=jnp.float32)
    w2 = 0.05 * jax.random.normal(k2, (hidden_dim, out_dim), dtype=jnp.float32)
    b2 = 0.01 * jax.random.normal(kb2, (1, out_dim), dtype=jnp.float32)
    w3 = 0.05 * jax.random.normal(k3, (out_dim, out_dim1), dtype=jnp.float32)
    b3 = 0.01 * jax.random.normal(kb3, (1, out_dim1), dtype=jnp.float32)

    r1, r2 = _reference(x, gamma, beta, w1, b1, w2, b2, w3, b3)

    # Precise path (fp32 matmuls, exact erf GELU): 1e-4 parity with torch fp32.
    x1, x2 = mlp_forward(x, gamma, beta, w1, b1, w2, b2, w3, b3, precise=True)
    jax.block_until_ready((x1, x2))
    assert x1.shape == (B, in_dim) and x2.shape == (B, S, out_dim1)
    assert jnp.allclose(x1, r1, atol=1e-4, rtol=1e-4)
    assert jnp.allclose(x2, r2, atol=1e-4, rtol=1e-4)

    # Fast path (bf16 MXU matmuls + tanh GELU): looser accuracy budget.
    f1, f2 = mlp_forward(x, gamma, beta, w1, b1, w2, b2, w3, b3, precise=False)
    jax.block_until_ready((f1, f2))
    assert f1.shape == (B, in_dim) and f2.shape == (B, S, out_dim1)
    assert jnp.allclose(f1, r1, atol=5e-2, rtol=5e-2)
    assert jnp.allclose(f2, r2, atol=5e-2, rtol=5e-2)

    print("KERNEL_OK")
</pallas_src>

<mosaic_0001>
module attributes {stable_mosaic.version = 11 : i64} {
  func.func @mlp_kernel(%arg0: i32, %arg1: i32, %arg2: memref<1x8x128xf32, #tpu.memory_space<vmem>>, %arg3: memref<1x128xf32, #tpu.memory_space<vmem>>, %arg4: memref<1x128xf32, #tpu.memory_space<vmem>>, %arg5: memref<128x128xf32, #tpu.memory_space<vmem>>, %arg6: memref<1x128xf32, #tpu.memory_space<vmem>>, %arg7: memref<128x128xf32, #tpu.memory_space<vmem>>, %arg8: memref<1x128xf32, #tpu.memory_space<vmem>>, %arg9: memref<128x128xf32, #tpu.memory_space<vmem>>, %arg10: memref<1x128xf32, #tpu.memory_space<vmem>>, %arg11: memref<1x1x128xf32, #tpu.memory_space<vmem>>, %arg12: memref<1x8x128xf32, #tpu.memory_space<vmem>>) attributes {dimension_semantics = [#tpu.dimension_semantics<parallel>, #tpu.dimension_semantics<arbitrary>], iteration_bounds = array<i64: 2, 1>, scalar_prefetch = 0 : i64, scratch_operands = 0 : i64, tpu.core_type = #tpu.core_type<tc>, window_params = [{transform_indices = @transform_0, window_bounds = array<i64: 1, 8, 128>}, {pipeline_mode = #tpu.pipeline_mode<synchronous>, transform_indices = @transform_1, window_bounds = array<i64: 1, 128>}, {pipeline_mode = #tpu.pipeline_mode<synchronous>, transform_indices = @transform_2, window_bounds = array<i64: 1, 128>}, {pipeline_mode = #tpu.pipeline_mode<synchronous>, transform_indices = @transform_3, window_bounds = array<i64: 128, 128>}, {pipeline_mode = #tpu.pipeline_mode<synchronous>, transform_indices = @transform_4, window_bounds = array<i64: 1, 128>}, {pipeline_mode = #tpu.pipeline_mode<synchronous>, transform_indices = @transform_5, window_bounds = array<i64: 128, 128>}, {pipeline_mode = #tpu.pipeline_mode<synchronous>, transform_indices = @transform_6, window_bounds = array<i64: 1, 128>}, {pipeline_mode = #tpu.pipeline_mode<synchronous>, transform_indices = @transform_7, window_bounds = array<i64: 128, 128>}, {pipeline_mode = #tpu.pipeline_mode<synchronous>, transform_indices = @transform_8, window_bounds = array<i64: 1, 128>}, {transform_indices = @transform_9, window_bounds = array<i64: 1, 1, 128>}, {transform_indices = @transform_10, window_bounds = array<i64: 1, 8, 128>}]} {
    %c0 = arith.constant 0 : index
    %c0_0 = arith.constant 0 : index
    %c0_1 = arith.constant 0 : index
    %0 = vector.load %arg2[%c0, %c0_0, %c0_1] : memref<1x8x128xf32, #tpu.memory_space<vmem>>, vector<1x8x128xf32>
    %1 = vector.shape_cast %0 : vector<1x8x128xf32> to vector<8x128xf32>
    %cst = arith.constant dense<0.000000e+00> : vector<8xf32>
    %2 = vector.multi_reduction <add>, %1, %cst [1] : vector<8x128xf32> to vector<8xf32>
    %3 = vector.shape_cast %2 : vector<8xf32> to vector<8x1xf32>
    %cst_2 = arith.constant 3.125000e-02 : f32
    %4 = vector.broadcast %cst_2 : f32 to vector<8x1xf32>
    %5 = arith.mulf %3, %4 : vector<8x1xf32>
    %6 = arith.mulf %1, %1 : vector<8x128xf32>
    %cst_3 = arith.constant dense<0.000000e+00> : vector<8xf32>
    %7 = vector.multi_reduction <add>, %6, %cst_3 [1] : vector<8x128xf32> to vector<8xf32>
    %8 = vector.shape_cast %7 : vector<8xf32> to vector<8x1xf32>
    %cst_4 = arith.constant 3.125000e-02 : f32
    %9 = vector.broadcast %cst_4 : f32 to vector<8x1xf32>
    %10 = arith.mulf %8, %9 : vector<8x1xf32>
    %11 = arith.mulf %5, %5 : vector<8x1xf32>
    %12 = arith.subf %10, %11 : vector<8x1xf32>
    %cst_5 = arith.constant 0.000000e+00 : f32
    %13 = vector.broadcast %cst_5 : f32 to vector<8x1xf32>
    %14 = arith.maximumf %12, %13 : vector<8x1xf32>
    %15 = vector.broadcast %5 : vector<8x1xf32> to vector<8x128xf32>
    %16 = arith.subf %1, %15 : vector<8x128xf32>
    %cst_6 = arith.constant 9.99999974E-6 : f32
    %17 = vector.broadcast %cst_6 : f32 to vector<8x1xf32>
    %18 = arith.addf %14, %17 : vector<8x1xf32>
    %19 = math.rsqrt %18 : vector<8x1xf32>
    %20 = vector.broadcast %19 : vector<8x1xf32> to vector<8x128xf32>
    %21 = arith.mulf %16, %20 : vector<8x128xf32>
    %c0_7 = arith.constant 0 : index
    %c0_8 = arith.constant 0 : index
    %22 = vector.load %arg3[%c0_7, %c0_8] : memref<1x128xf32, #tpu.memory_space<vmem>>, vector<1x128xf32>
    %23 = vector.broadcast %22 : vector<1x128xf32> to vector<8x128xf32>
    %24 = arith.mulf %21, %23 : vector<8x128xf32>
    %c0_9 = arith.constant 0 : index
    %c0_10 = arith.constant 0 : index
    %25 = vector.load %arg4[%c0_9, %c0_10] : memref<1x128xf32, #tpu.memory_space<vmem>>, vector<1x128xf32>
    %26 = vector.broadcast %25 : vector<1x128xf32> to vector<8x128xf32>
    %27 = arith.addf %24, %26 : vector<8x128xf32>
    %c0_11 = arith.constant 0 : index
    %c0_12 = arith.constant 0 : index
    %28 = vector.load %arg5[%c0_11, %c0_12] : memref<128x128xf32, #tpu.memory_space<vmem>>, vector<128x128xf32>
    %cst_13 = arith.constant dense<0.000000e+00> : vector<8x128xf32>
    %29 = tpu.matmul %27, %28, %cst_13 {dimension_numbers = #tpu.dot_dimension_numbers<[1], [0], [0], [1], [0, 0, 1, 1], [], []>} : vector<8x128xf32>, vector<128x128xf32>, vector<8x128xf32> -> vector<8x128xf32>
    %c0_14 = arith.constant 0 : index
    %c0_15 = arith.constant 0 : index
    %30 = vector.load %arg6[%c0_14, %c0_15] : memref<1x128xf32, #tpu.memory_space<vmem>>, vector<1x128xf32>
    %31 = vector.broadcast %30 : vector<1x128xf32> to vector<8x128xf32>
    %32 = arith.addf %29, %31 : vector<8x128xf32>
    %cst_16 = arith.constant 5.000000e-01 : f32
    %33 = vector.broadcast %cst_16 : f32 to vector<8x128xf32>
    %34 = arith.mulf %33, %32 : vector<8x128xf32>
    %cst_17 = arith.constant 0.707106769 : f32
    %35 = vector.broadcast %cst_17 : f32 to vector<8x128xf32>
    %36 = arith.mulf %32, %35 : vector<8x128xf32>
    %37 = math.erf %36 : vector<8x128xf32>
    %cst_18 = arith.constant 1.000000e+00 : f32
    %38 = vector.broadcast %cst_18 : f32 to vector<8x128xf32>
    %39 = arith.addf %38, %37 : vector<8x128xf32>
    %40 = arith.mulf %34, %39 : vector<8x128xf32>
    %c0_19 = arith.constant 0 : index
    %c0_20 = arith.constant 0 : index
    %41 = vector.load %arg7[%c0_19, %c0_20] : memref<128x128xf32, #tpu.memory_space<vmem>>, vector<128x128xf32>
    %cst_21 = arith.constant dense<0.000000e+00> : vector<8x128xf32>
    %42 = tpu.matmul %40, %41, %cst_21 {dimension_numbers = #tpu.dot_dimension_numbers<[1], [0], [0], [1], [0, 0, 1, 1], [], []>} : vector<8x128xf32>, vector<128x128xf32>, vector<8x128xf32> -> vector<8x128xf32>
    %c0_22 = arith.constant 0 : index
    %c0_23 = arith.constant 0 : index
    %43 = vector.load %arg8[%c0_22, %c0_23] : memref<1x128xf32, #tpu.memory_space<vmem>>, vector<1x128xf32>
    %44 = vector.broadcast %43 : vector<1x128xf32> to vector<8x128xf32>
    %45 = arith.addf %42, %44 : vector<8x128xf32>
    %cst_24 = arith.constant 5.000000e-01 : f32
    %46 = vector.broadcast %cst_24 : f32 to vector<8x128xf32>
    %47 = arith.mulf %46, %45 : vector<8x128xf32>
    %cst_25 = arith.constant 0.707106769 : f32
    %48 = vector.broadcast %cst_25 : f32 to vector<8x128xf32>
    %49 = arith.mulf %45, %48 : vector<8x128xf32>
    %50 = math.erf %49 : vector<8x128xf32>
    %cst_26 = arith.constant 1.000000e+00 : f32
    %51 = vector.broadcast %cst_26 : f32 to vector<8x128xf32>
    %52 = arith.addf %51, %50 : vector<8x128xf32>
    %53 = arith.mulf %47, %52 : vector<8x128xf32>
    %c0_27 = arith.constant 0 : index
    %c0_28 = arith.constant 0 : index
    %54 = vector.load %arg9[%c0_27, %c0_28] : memref<128x128xf32, #tpu.memory_space<vmem>>, vector<128x128xf32>
    %cst_29 = arith.constant dense<0.000000e+00> : vector<8x128xf32>
    %55 = tpu.matmul %53, %54, %cst_29 {dimension_numbers = #tpu.dot_dimension_numbers<[1], [0], [0], [1], [0, 0, 1, 1], [], []>} : vector<8x128xf32>, vector<128x128xf32>, vector<8x128xf32> -> vector<8x128xf32>
    %c0_30 = arith.constant 0 : index
    %c0_31 = arith.constant 0 : index
    %56 = vector.load %arg10[%c0_30, %c0_31] : memref<1x128xf32, #tpu.memory_space<vmem>>, vector<1x128xf32>
    %57 = vector.broadcast %56 : vector<1x128xf32> to vector<8x128xf32>
    %58 = arith.addf %55, %57 : vector<8x128xf32>
    %59 = vector.shape_cast %58 : vector<8x128xf32> to vector<1x8x128xf32>
    %c0_32 = arith.constant 0 : index
    %c0_33 = arith.constant 0 : index
    %c0_34 = arith.constant 0 : index
    %60 = vector.load %arg12[%c0_32, %c0_33, %c0_34] : memref<1x8x128xf32, #tpu.memory_space<vmem>>, vector<1x8x128xf32>
    tpu.vector_store %arg12[%c0_32, %c0_33, %c0_34], %59 {strides = array<i32>} : memref<1x8x128xf32, #tpu.memory_space<vmem>>, vector<1x8x128xf32>,
    %61 = arith.addf %45, %1 : vector<8x128xf32>
    %62 = vector.shape_cast %61 : vector<8x128xf32> to vector<1x8x128xf32>
    %c0_i32 = arith.constant 0 : i32
    %63 = arith.cmpi eq, %arg1, %c0_i32 : i32
    %64 = arith.extui %63 : i1 to i32
    %c0_i32_35 = arith.constant 0 : i32
    %65 = arith.cmpi ne, %64, %c0_i32_35 : i32
    scf.if %65 {
      %cst_45 = arith.constant 0.000000e+00 : f32
      %74 = vector.broadcast %cst_45 : f32 to vector<1x1x128xf32>
      %c0_46 = arith.constant 0 : index
      %c0_47 = arith.constant 0 : index
      %c0_48 = arith.constant 0 : index
      %75 = vector.load %arg11[%c0_46, %c0_47, %c0_48] : memref<1x1x128xf32, #tpu.memory_space<vmem>>, vector<1x1x128xf32>
      tpu.vector_store %arg11[%c0_46, %c0_47, %c0_48], %74 {strides = array<i32>} : memref<1x1x128xf32, #tpu.memory_space<vmem>>, vector<1x1x128xf32>,
    } else {
    }
    %c0_36 = arith.constant 0 : index
    %c0_37 = arith.constant 0 : index
    %c0_38 = arith.constant 0 : index
    %66 = vector.load %arg11[%c0_36, %c0_37, %c0_38] : memref<1x1x128xf32, #tpu.memory_space<vmem>>, vector<1x1x128xf32>
    %cst_39 = arith.constant dense<0.000000e+00> : vector<1x128xf32>
    %67 = vector.multi_reduction <add>, %62, %cst_39 [1] : vector<1x8x128xf32> to vector<1x128xf32>
    %68 = vector.shape_cast %67 : vector<1x128xf32> to vector<1x1x128xf32>
    %69 = arith.addf %66, %68 : vector<1x1x128xf32>
    %c0_40 = arith.constant 0 : index
    %c0_41 = arith.constant 0 : index
    %c0_42 = arith.constant 0 : index
    %70 = vector.load %arg11[%c0_40, %c0_41, %c0_42] : memref<1x1x128xf32, #tpu.memory_space<vmem>>, vector<1x1x128xf32>
    tpu.vector_store %arg11[%c0_40, %c0_41, %c0_42], %69 {strides = array<i32>} : memref<1x1x128xf32, #tpu.memory_space<vmem>>, vector<1x1x128xf32>,
    %c0_i32_43 = arith.constant 0 : i32
    %71 = arith.cmpi eq, %arg1, %c0_i32_43 : i32
    %72 = arith.extui %71 : i1 to i32
    %c0_i32_44 = arith.constant 0 : i32
    %73 = arith.cmpi ne, %72, %c0_i32_44 : i32
    scf.if %73 {
      %c0_45 = arith.constant 0 : index
      %c0_46 = arith.constant 0 : index
      %c0_47 = arith.constant 0 : index
      %74 = vector.load %arg11[%c0_45, %c0_46, %c0_47] : memref<1x1x128xf32, #tpu.memory_space<vmem>>, vector<1x1x128xf32>
      %cst_48 = arith.constant 1.250000e-01 : f32
      %75 = vector.broadcast %cst_48 : f32 to vector<1x1x128xf32>
      %76 = arith.mulf %74, %75 : vector<1x1x128xf32>
      %c0_49 = arith.constant 0 : index
      %c0_50 = arith.constant 0 : index
      %c0_51 = arith.constant 0 : index
      %77 = vector.load %arg11[%c0_49, %c0_50, %c0_51] : memref<1x1x128xf32, #tpu.memory_space<vmem>>, vector<1x1x128xf32>
      tpu.vector_store %arg11[%c0_49, %c0_50, %c0_51], %76 {strides = array<i32>} : memref<1x1x128xf32, #tpu.memory_space<vmem>>, vector<1x1x128xf32>,
    } else {
    }
    return
  }
  func.func @transform_0(%arg0: i32, %arg1: i32) -> (i32, i32, i32) {
    %c0_i32 = arith.constant 0 : i32
    %c0_i32_0 = arith.constant 0 : i32
    return %arg0, %arg1, %c0_i32 : i32, i32, i32
  }
  func.func @transform_1(%arg0: i32, %arg1: i32) -> (i32, i32) {
    %c0_i32 = arith.constant 0 : i32
    %c0_i32_0 = arith.constant 0 : i32
    %c0_i32_1 = arith.constant 0 : i32
    return %c0_i32, %c0_i32_0 : i32, i32
  }
  func.func @transform_2(%arg0: i32, %arg1: i32) -> (i32, i32) {
    %c0_i32 = arith.constant 0 : i32
    %c0_i32_0 = arith.constant 0 : i32
    %c0_i32_1 = arith.constant 0 : i32
    return %c0_i32, %c0_i32_0 : i32, i32
  }
  func.func @transform_3(%arg0: i32, %arg1: i32) -> (i32, i32) {
    %c0_i32 = arith.constant 0 : i32
    %c0_i32_0 = arith.constant 0 : i32
    %c0_i32_1 = arith.constant 0 : i32
    return %c0_i32, %c0_i32_0 : i32, i32
  }
  func.func @transform_4(%arg0: i32, %arg1: i32) -> (i32, i32) {
    %c0_i32 = arith.constant 0 : i32
    %c0_i32_0 = arith.constant 0 : i32
    %c0_i32_1 = arith.constant 0 : i32
    return %c0_i32, %c0_i32_0 : i32, i32
  }
  func.func @transform_5(%arg0: i32, %arg1: i32) -> (i32, i32) {
    %c0_i32 = arith.constant 0 : i32
    %c0_i32_0 = arith.constant 0 : i32
    %c0_i32_1 = arith.constant 0 : i32
    return %c0_i32, %c0_i32_0 : i32, i32
  }
  func.func @transform_6(%arg0: i32, %arg1: i32) -> (i32, i32) {
    %c0_i32 = arith.constant 0 : i32
    %c0_i32_0 = arith.constant 0 : i32
    %c0_i32_1 = arith.constant 0 : i32
    return %c0_i32, %c0_i32_0 : i32, i32
  }
  func.func @transform_7(%arg0: i32, %arg1: i32) -> (i32, i32) {
    %c0_i32 = arith.constant 0 : i32
    %c0_i32_0 = arith.constant 0 : i32
    %c0_i32_1 = arith.constant 0 : i32
    return %c0_i32, %c0_i32_0 : i32, i32
  }
  func.func @transform_8(%arg0: i32, %arg1: i32) -> (i32, i32) {
    %c0_i32 = arith.constant 0 : i32
    %c0_i32_0 = arith.constant 0 : i32
    %c0_i32_1 = arith.constant 0 : i32
    return %c0_i32, %c0_i32_0 : i32, i32
  }
  func.func @transform_9(%arg0: i32, %arg1: i32) -> (i32, i32, i32) {
    %c0_i32 = arith.constant 0 : i32
    %c0_i32_0 = arith.constant 0 : i32
    %c0_i32_1 = arith.constant 0 : i32
    return %arg0, %c0_i32, %c0_i32_0 : i32, i32, i32
  }
  func.func @transform_10(%arg0: i32, %arg1: i32) -> (i32, i32, i32) {
    %c0_i32 = arith.constant 0 : i32
    %c0_i32_0 = arith.constant 0 : i32
    return %arg0, %arg1, %c0_i32 : i32, i32, i32
  }
}

</mosaic_0001>

<llo_original>
// kernel: tpu_custom_call.1
$region0: #{tpu_custom_call.1}
  #allocation0 [shape = 'u32[]', space=smem, size = 0x4, offset = 0x4, fixed_abs, tag = 'smem constant byte address 0x4 - core index']
  #allocation1 [shape = 'u32[144,128]{1,0:T(1,128)}', space=vmem, size = 0x12000, scoped, tag = 'internal scratch']
  %s0 = inlined_call_operand.hbm [shape: f32[2,8,128], index: 0, kind: input, shape index: {}]
  %s1 = inlined_call_operand.vmem [shape: f32[1,128], index: 1, kind: input, shape index: {}]
  %s2 = inlined_call_operand.vmem [shape: f32[1,128], index: 2, kind: input, shape index: {}]
  %s3 = inlined_call_operand.hbm [shape: f32[128,128], index: 3, kind: input, shape index: {}]
  %s4 = inlined_call_operand.vmem [shape: f32[1,128], index: 4, kind: input, shape index: {}]
  %s5 = inlined_call_operand.hbm [shape: f32[128,128], index: 5, kind: input, shape index: {}]
  %s6 = inlined_call_operand.vmem [shape: f32[1,128], index: 6, kind: input, shape index: {}]
  %s7 = inlined_call_operand.hbm [shape: f32[128,128], index: 7, kind: input, shape index: {}]
  %s8 = inlined_call_operand.vmem [shape: f32[1,128], index: 8, kind: input, shape index: {}]
  %s9 = inlined_call_operand.hbm [shape: f32[2,1,128], index: 9, kind: output, shape index: {0}]
  %s10 = inlined_call_operand.hbm [shape: f32[2,8,128], index: 10, kind: output, shape index: {1}]
  %11 = xla_tuple %s9, %s10
  %s12 = sld [smem:[#allocation0]]
  $region101: #{tpu_custom_call.1} parent=0
    _
  %s14 = ssub.s32 1, %s12
  %s15 = scalar_select 0, %s14, %s12
  $region1: #{tpu_custom_call.1} parent=0
    #allocation2 [shape = 'u8[8192]{0}', space=vmem, size = 0x2000, scoped, tag = 'input window, operand 0']
    #allocation3 [shape = 's32[2]{0}', space=sflag, size = 0x8, scoped, tag = 'scoped memory for tpu_custom_call.1']
    #allocation4 [shape = 's32[2]{0}', space=sflag, size = 0x8, scoped, tag = 'scoped memory for tpu_custom_call.1']
    #allocation5 [shape = 'u8[65536]{0}', space=vmem, size = 0x10000, scoped, tag = 'input window, operand 3, single buffered']
    #allocation6 [shape = 's32[1]{0}', space=sflag, size = 0x4, scoped, tag = 'scoped memory for tpu_custom_call.1']
    #allocation7 [shape = 'u8[65536]{0}', space=vmem, size = 0x10000, scoped, tag = 'input window, operand 5, single buffered']
    #allocation8 [shape = 'u8[65536]{0}', space=vmem, size = 0x10000, scoped, tag = 'input window, operand 7, single buffered']
    #allocation9 [shape = 's32[1]{0}', space=sflag, size = 0x4, scoped, tag = 'scoped memory for tpu_custom_call.1']
    #allocation10 [shape = 'u8[1024]{0}', space=vmem, size = 0x400, scoped, tag = 'output window, operand 0']
    #allocation11 [shape = 'u8[8192]{0}', space=vmem, size = 0x2000, scoped, tag = 'output window, operand 1']
    #allocation12 [shape = 's32[2]{0}', space=sflag, size = 0x8, scoped, tag = 'scoped memory for tpu_custom_call.1']
    %16 = vsyncpa [#allocation3], 0
    %s17 = scalar_lea.sflag [#allocation3], 1
    %18 = vsyncpa %s17, 0
    %19 = vsyncpa [#allocation6], 0
    %20 = vsyncpa [#allocation9], 0
    %21 = vsyncpa [#allocation4], 0
    %s22 = scalar_lea.sflag [#allocation4], 1
    %23 = vsyncpa %s22, 0
    %24 = vsyncpa [#allocation12], 0
    %s25 = scalar_lea.sflag [#allocation12], 1
    %26 = vsyncpa %s25, 0
    loop: start=0, step=1, limit=4
    $region2: #{tpu_custom_call.1} parent=1 // loop_pre_header
      _
    $region3: #{tpu_custom_call.1} parent=1 // loop_header
      %s28 = sphi 0, %s32
      %p29 = scmp.ge.s32.totalorder %s28, 4
      %s35 = sphi 0, %s47
      %s36 = sphi 0, %s43
      %s37 = sphi 0, %s35
      %s38 = sphi 0, %s36
      %s39 = sphi 0, %s37
      %s40 = sphi 0, %s38
      %s52 = sphi 0, %s54
      %s55 = sphi 0, %s52
      %s56 = sphi 0, %s55
      %s72 = sphi 0, %s56
      %s76 = sphi 0, %s76
      %s78 = sphi 0, %s76
      %s79 = sphi 0, %s78
      %s93 = sphi 0, %s79
      %s97 = sphi 0, %s97
      %s99 = sphi 0, %s97
      %s100 = sphi 0, %s99
      %s114 = sphi 0, %s100
      %s118 = sphi 0, %s118
      %s120 = sphi 0, %s118
      %s121 = sphi 0, %s120
      %s135 = sphi 0, %s121
      %s139 = sphi 0, %s139
      %s141 = sphi 0, %s139
      %s142 = sphi 0, %s141
      %s156 = sphi 0, %s142
      %s160 = sphi 0, %s160
      %s162 = sphi 0, %s160
      %s163 = sphi 0, %s162
      %s177 = sphi 0, %s163
      %s181 = sphi 0, %s181
      %s183 = sphi 0, %s181
      %s184 = sphi 0, %s183
      %s198 = sphi 0, %s184
      %s202 = sphi 0, %s202
      %s204 = sphi 0, %s202
      %s205 = sphi 0, %s204
      %s219 = sphi 0, %s205
      %s223 = sphi 0, %s223
      %s225 = sphi 0, %s223
      %s226 = sphi 0, %s225
      %s240 = sphi 0, %s226
      %s246 = sphi 0, %s248
      %s249 = sphi 0, %s246
      %s250 = sphi 0, %s249
      %s266 = sphi 0, %s250
      %s274 = sphi 0, %s276
      %s277 = sphi 0, %s274
      %s278 = sphi 0, %s277
      %s294 = sphi 0, %s278
    $region4: #{tpu_custom_call.1} parent=1 // loop_header_branch
      %31 = sbr.rel (%p29) target = $region8
    $region5: #{tpu_custom_call.1} parent=1 // loop_body
      %s33 = ssub.s32 %s28, 1
      %s34 = ssub.s32 %s28, 2
      %s41 = sadd.s32 1, %s36
      %p42 = scmp.ge.s32.totalorder %s41, 1
      %s43 = scalar_select %p42, 0, %s41
      %s44 = sadd.s32 1, %s35
      %s45 = scalar_select %p42, %s44, %s35
      %p46 = scmp.ge.s32.totalorder %s45, 2
      %s47 = scalar_select %p46, 0, %s45
      %s48 = ssub.s32 %s35, %s47
      %s49 = ssub.s32 %s36, %s43
      %s50 = sor.u32 %s48, %s49
      %p51 = scmp.eq.s32.totalorder %s50, 0
      %s53 = sadd.s32 %s52, 1
      %s54 = scalar_select %p51, %s52, %s53
      %p57 = pneg %p51
      %p58 = scmp.eq.s32.totalorder %s28, 1
      %p59 = por %p57, %p58
      %p60 = scmp.ne.s32.totalorder %s52, %s55
      %p61 = scmp.eq.s32.totalorder %s28, 0
      %p62 = por %p60, %p61
      %p63 = scmp.ne.s32.totalorder %s52, %s55
      %p64 = scmp.eq.s32.totalorder %s33, 1
      %p65 = por %p63, %p64
      %p66 = scmp.ne.s32.totalorder %s55, %s56
      %p67 = scmp.eq.s32.totalorder %s33, 0
      %p68 = por %p66, %p67
      %p69 = scmp.ne.s32.totalorder %s55, %s56
      %p70 = scmp.eq.s32.totalorder %s34, 1
      %p71 = por %p69, %p70
      %p73 = scmp.ne.s32.totalorder %s56, %s72
      %p74 = scmp.eq.s32.totalorder %s34, 0
      %p75 = por %p73, %p74
      %s77 = sadd.s32 %s76, 1
      %p80 = scmp.eq.s32.totalorder %s28, 1
      %p81 = scmp.ne.s32.totalorder %s76, %s78
      %p82 = scmp.eq.s32.totalorder %s28, 0
      %p83 = por %p81, %p82
      %p84 = scmp.ne.s32.totalorder %s76, %s78
      %p85 = scmp.eq.s32.totalorder %s33, 1
      %p86 = por %p84, %p85
      %p87 = scmp.ne.s32.totalorder %s78, %s79
      %p88 = scmp.eq.s32.totalorder %s33, 0
      %p89 = por %p87, %p88
      %p90 = scmp.ne.s32.totalorder %s78, %s79
      %p91 = scmp.eq.s32.totalorder %s34, 1
      %p92 = por %p90, %p91
      %p94 = scmp.ne.s32.totalorder %s79, %s93
      %p95 = scmp.eq.s32.totalorder %s34, 0
      %p96 = por %p94, %p95
      %s98 = sadd.s32 %s97, 1
      %p101 = scmp.eq.s32.totalorder %s28, 1
      %p102 = scmp.ne.s32.totalorder %s97, %s99
      %p103 = scmp.eq.s32.totalorder %s28, 0
      %p104 = por %p102, %p103
      %p105 = scmp.ne.s32.totalorder %s97, %s99
      %p106 = scmp.eq.s32.totalorder %s33, 1
      %p107 = por %p105, %p106
      %p108 = scmp.ne.s32.totalorder %s99, %s100
      %p109 = scmp.eq.s32.totalorder %s33, 0
      %p110 = por %p108, %p109
      %p111 = scmp.ne.s32.totalorder %s99, %s100
      %p112 = scmp.eq.s32.totalorder %s34, 1
      %p113 = por %p111, %p112
      %p115 = scmp.ne.s32.totalorder %s100, %s114
      %p116 = scmp.eq.s32.totalorder %s34, 0
      %p117 = por %p115, %p116
      %s119 = sadd.s32 %s118, 1
      %p122 = scmp.eq.s32.totalorder %s28, 1
      %p123 = scmp.ne.s32.totalorder %s118, %s120
      %p124 = scmp.eq.s32.totalorder %s28, 0
      %p125 = por %p123, %p124
      %p126 = scmp.ne.s32.totalorder %s118, %s120
      %p127 = scmp.eq.s32.totalorder %s33, 1
      %p128 = por %p126, %p127
      %p129 = scmp.ne.s32.totalorder %s120, %s121
      %p130 = scmp.eq.s32.totalorder %s33, 0
      %p131 = por %p129, %p130
      %p132 = scmp.ne.s32.totalorder %s120, %s121
      %p133 = scmp.eq.s32.totalorder %s34, 1
      %p134 = por %p132, %p133
      %p136 = scmp.ne.s32.totalorder %s121, %s135
      %p137 = scmp.eq.s32.totalorder %s34, 0
      %p138 = por %p136, %p137
      %s140 = sadd.s32 %s139, 1
      %p143 = scmp.eq.s32.totalorder %s28, 1
      %p144 = scmp.ne.s32.totalorder %s139, %s141
      %p145 = scmp.eq.s32.totalorder %s28, 0
      %p146 = por %p144, %p145
      %p147 = scmp.ne.s32.totalorder %s139, %s141
      %p148 = scmp.eq.s32.totalorder %s33, 1
      %p149 = por %p147, %p148
      %p150 = scmp.ne.s32.totalorder %s141, %s142
      %p151 = scmp.eq.s32.totalorder %s33, 0
      %p152 = por %p150, %p151
      %p153 = scmp.ne.s32.totalorder %s141, %s142
      %p154 = scmp.eq.s32.totalorder %s34, 1
      %p155 = por %p153, %p154
      %p157 = scmp.ne.s32.totalorder %s142, %s156
      %p158 = scmp.eq.s32.totalorder %s34, 0
      %p159 = por %p157, %p158
      %s161 = sadd.s32 %s160, 1
      %p164 = scmp.eq.s32.totalorder %s28, 1
      %p165 = scmp.ne.s32.totalorder %s160, %s162
      %p166 = scmp.eq.s32.totalorder %s28, 0
      %p167 = por %p165, %p166
      %p168 = scmp.ne.s32.totalorder %s160, %s162
      %p169 = scmp.eq.s32.totalorder %s33, 1
      %p170 = por %p168, %p169
      %p171 = scmp.ne.s32.totalorder %s162, %s163
      %p172 = scmp.eq.s32.totalorder %s33, 0
      %p173 = por %p171, %p172
      %p174 = scmp.ne.s32.totalorder %s162, %s163
      %p175 = scmp.eq.s32.totalorder %s34, 1
      %p176 = por %p174, %p175
      %p178 = scmp.ne.s32.totalorder %s163, %s177
      %p179 = scmp.eq.s32.totalorder %s34, 0
      %p180 = por %p178, %p179
      %s182 = sadd.s32 %s181, 1
      %p185 = scmp.eq.s32.totalorder %s28, 1
      %p186 = scmp.ne.s32.totalorder %s181, %s183
      %p187 = scmp.eq.s32.totalorder %s28, 0
      %p188 = por %p186, %p187
      %p189 = scmp.ne.s32.totalorder %s181, %s183
      %p190 = scmp.eq.s32.totalorder %s33, 1
      %p191 = por %p189, %p190
      %p192 = scmp.ne.s32.totalorder %s183, %s184
      %p193 = scmp.eq.s32.totalorder %s33, 0
      %p194 = por %p192, %p193
      %p195 = scmp.ne.s32.totalorder %s183, %s184
      %p196 = scmp.eq.s32.totalorder %s34, 1
      %p197 = por %p195, %p196
      %p199 = scmp.ne.s32.totalorder %s184, %s198
      %p200 = scmp.eq.s32.totalorder %s34, 0
      %p201 = por %p199, %p200
      %s203 = sadd.s32 %s202, 1
      %p206 = scmp.eq.s32.totalorder %s28, 1
      %p207 = scmp.ne.s32.totalorder %s202, %s204
      %p208 = scmp.eq.s32.totalorder %s28, 0
      %p209 = por %p207, %p208
      %p210 = scmp.ne.s32.totalorder %s202, %s204
      %p211 = scmp.eq.s32.totalorder %s33, 1
      %p212 = por %p210, %p211
      %p213 = scmp.ne.s32.totalorder %s204, %s205
      %p214 = scmp.eq.s32.totalorder %s33, 0
      %p215 = por %p213, %p214
      %p216 = scmp.ne.s32.totalorder %s204, %s205
      %p217 = scmp.eq.s32.totalorder %s34, 1
      %p218 = por %p216, %p217
      %p220 = scmp.ne.s32.totalorder %s205, %s219
      %p221 = scmp.eq.s32.totalorder %s34, 0
      %p222 = por %p220, %p221
      %s224 = sadd.s32 %s223, 1
      %p227 = scmp.eq.s32.totalorder %s28, 1
      %p228 = scmp.ne.s32.totalorder %s223, %s225
      %p229 = scmp.eq.s32.totalorder %s28, 0
      %p230 = por %p228, %p229
      %p231 = scmp.ne.s32.totalorder %s223, %s225
      %p232 = scmp.eq.s32.totalorder %s33, 1
      %p233 = por %p231, %p232
      %p234 = scmp.ne.s32.totalorder %s225, %s226
      %p235 = scmp.eq.s32.totalorder %s33, 0
      %p236 = por %p234, %p235
      %p237 = scmp.ne.s32.totalorder %s225, %s226
      %p238 = scmp.eq.s32.totalorder %s34, 1
      %p239 = por %p237, %p238
      %p241 = scmp.ne.s32.totalorder %s226, %s240
      %p242 = scmp.eq.s32.totalorder %s34, 0
      %p243 = por %p241, %p242
      %s244 = ssub.s32 %s35, %s47
      %p245 = scmp.eq.s32.totalorder %s244, 0
      %s247 = sadd.s32 %s246, 1
      %s248 = scalar_select %p245, %s246, %s247
      %p251 = pneg %p245
      %p252 = scmp.eq.s32.totalorder %s28, 1
      %p253 = por %p251, %p252
      %p254 = scmp.ne.s32.totalorder %s246, %s249
      %p255 = scmp.eq.s32.totalorder %s28, 0
      %p256 = por %p254, %p255
      %p257 = scmp.ne.s32.totalorder %s246, %s249
      %p258 = scmp.eq.s32.totalorder %s33, 1
      %p259 = por %p257, %p258
      %p260 = scmp.ne.s32.totalorder %s249, %s250
      %p261 = scmp.eq.s32.totalorder %s33, 0
      %p262 = por %p260, %p261
      %p263 = scmp.ne.s32.totalorder %s249, %s250
      %p264 = scmp.eq.s32.totalorder %s34, 1
      %p265 = por %p263, %p264
      %p267 = scmp.ne.s32.totalorder %s250, %s266
      %p268 = scmp.eq.s32.totalorder %s34, 0
      %p269 = por %p267, %p268
      %s270 = ssub.s32 %s35, %s47
      %s271 = ssub.s32 %s36, %s43
      %s272 = sor.u32 %s270, %s271
      %p273 = scmp.eq.s32.totalorder %s272, 0
      %s275 = sadd.s32 %s274, 1
      %s276 = scalar_select %p273, %s274, %s275
      %p279 = pneg %p273
      %p280 = scmp.eq.s32.totalorder %s28, 1
      %p281 = por %p279, %p280
      %p282 = scmp.ne.s32.totalorder %s274, %s277
      %p283 = scmp.eq.s32.totalorder %s28, 0
      %p284 = por %p282, %p283
      %p285 = scmp.ne.s32.totalorder %s274, %s277
      %p286 = scmp.eq.s32.totalorder %s33, 1
      %p287 = por %p285, %p286
      %p288 = scmp.ne.s32.totalorder %s277, %s278
      %p289 = scmp.eq.s32.totalorder %s33, 0
      %p290 = por %p288, %p289
      %p291 = scmp.ne.s32.totalorder %s277, %s278
      %p292 = scmp.eq.s32.totalorder %s34, 1
      %p293 = por %p291, %p292
      %p295 = scmp.ne.s32.totalorder %s278, %s294
      %p296 = scmp.eq.s32.totalorder %s34, 0
      %p297 = por %p295, %p296
      %p298 = scmp.le.s32.totalorder 1, %s28
      %p299 = scmp.lt.s32.totalorder %s28, 3
      %p300 = pnand %p298, %p299
      %p301 = pneg %p300
      // Predicated region
      $region9: #{tpu_custom_call.1} parent=5 // pred_check
        _
      $region10: #{tpu_custom_call.1} parent=5 // pred_check_branch
        %303 = sbr.rel (%p300) target = $region12
      $region11: #{tpu_custom_call.1} parent=5 // pred_region
        %s304 = ssub.s32 %s28, 1
        // Predicated region
        $region13: #{tpu_custom_call.1} parent=11 // pred_check
          %p305 = pneg %p89
        $region14: #{tpu_custom_call.1} parent=11 // pred_check_branch
          %307 = sbr.rel (%p305) target = $region16
        $region15: #{tpu_custom_call.1} parent=11 // pred_region
          _
        $region16: #{tpu_custom_call.1} parent=11 // pred_fallthru
          _
        // Predicated region
        $region17: #{tpu_custom_call.1} parent=11 // pred_check
          %p308 = pneg %p110
        $region18: #{tpu_custom_call.1} parent=11 // pred_check_branch
          %310 = sbr.rel (%p308) target = $region20
        $region19: #{tpu_custom_call.1} parent=11 // pred_region
          _
        $region20: #{tpu_custom_call.1} parent=11 // pred_fallthru
          _
        // Predicated region
        $region21: #{tpu_custom_call.1} parent=11 // pred_check
          %p311 = pneg %p131
        $region22: #{tpu_custom_call.1} parent=11 // pred_check_branch
          %313 = sbr.rel (%p311) target = $region24
        $region23: #{tpu_custom_call.1} parent=11 // pred_region
          %s315 = ssub.s32 2048, 2048
          %316 = vsyncadd [#allocation6], %s315
          %s317 = sshll.u32 [#allocation5], 4
          %s318 = int_to_ptr.vmem [resolvable:$true] %s317
          %323 = dma.hbm_to_vmem [thread:$0]  %s3, 2048, %s318, [#allocation6], 128, 128, 8
        $region24: #{tpu_custom_call.1} parent=11 // pred_fallthru
          _
        // Predicated region
        $region25: #{tpu_custom_call.1} parent=11 // pred_check
          %p324 = pneg %p152
        $region26: #{tpu_custom_call.1} parent=11 // pred_check_branch
          %326 = sbr.rel (%p324) target = $region28
        $region27: #{tpu_custom_call.1} parent=11 // pred_region
          _
        $region28: #{tpu_custom_call.1} parent=11 // pred_fallthru
          _
        // Predicated region
        $region29: #{tpu_custom_call.1} parent=11 // pred_check
          %p327 = pneg %p173
        $region30: #{tpu_custom_call.1} parent=11 // pred_check_branch
          %329 = sbr.rel (%p327) target = $region32
        $region31: #{tpu_custom_call.1} parent=11 // pred_region
          %s331 = ssub.s32 2048, 2048
          %332 = vsyncadd [#allocation6], %s331
          %s333 = sshll.u32 [#allocation7], 4
          %s334 = int_to_ptr.vmem [resolvable:$true] %s333
          %339 = dma.hbm_to_vmem [thread:$0]  %s5, 2048, %s334, [#allocation6], 128, 128, 8
        $region32: #{tpu_custom_call.1} parent=11 // pred_fallthru
          _
        // Predicated region
        $region33: #{tpu_custom_call.1} parent=11 // pred_check
          %p340 = pneg %p194
        $region34: #{tpu_custom_call.1} parent=11 // pred_check_branch
          %342 = sbr.rel (%p340) target = $region36
        $region35: #{tpu_custom_call.1} parent=11 // pred_region
          _
        $region36: #{tpu_custom_call.1} parent=11 // pred_fallthru
          _
        // Predicated region
        $region37: #{tpu_custom_call.1} parent=11 // pred_check
          %p343 = pneg %p215
        $region38: #{tpu_custom_call.1} parent=11 // pred_check_branch
          %345 = sbr.rel (%p343) target = $region40
        $region39: #{tpu_custom_call.1} parent=11 // pred_region
          %s347 = ssub.s32 2048, 2048
          %348 = vsyncadd [#allocation9], %s347
          %s349 = sshll.u32 [#allocation8], 4
          %s350 = int_to_ptr.vmem [resolvable:$true] %s349
          %355 = dma.hbm_to_vmem [thread:$0]  %s7, 2048, %s350, [#allocation9], 128, 128, 8
        $region40: #{tpu_custom_call.1} parent=11 // pred_fallthru
          _
        // Predicated region
        $region41: #{tpu_custom_call.1} parent=11 // pred_check
          %p356 = pneg %p236
        $region42: #{tpu_custom_call.1} parent=11 // pred_check_branch
          %358 = sbr.rel (%p356) target = $region44
        $region43: #{tpu_custom_call.1} parent=11 // pred_region
          _
        $region44: #{tpu_custom_call.1} parent=11 // pred_fallthru
          _
      $region12: #{tpu_custom_call.1} parent=5 // pred_fallthru
        _
      %p359 = scmp.lt.s32.totalorder %s28, 2
      // Predicated region
      $region45: #{tpu_custom_call.1} parent=5 // pred_check
        %p360 = pneg %p359
      $region46: #{tpu_custom_call.1} parent=5 // pred_check_branch
        %362 = sbr.rel (%p360) target = $region48
      $region47: #{tpu_custom_call.1} parent=5 // pred_region
        // Predicated region
        $region49: #{tpu_custom_call.1} parent=47 // pred_check
          %p363 = pneg %p62
        $region50: #{tpu_custom_call.1} parent=47 // pred_check_branch
          %365 = sbr.rel (%p363) target = $region52
        $region51: #{tpu_custom_call.1} parent=47 // pred_region
          %s366 = sand.u32 %s52, 1
          %s367 = scalar_lea.sflag [#allocation3], %s366
          %s368 = sand.u32 %s52, 1
          %s369 = smul.addr %s368, 8
          %s370 = scalar_lea.vmem [#allocation2], %s369
          %s372 = ssub.s32 128, 128
          %373 = vsyncadd %s367, %s372
          %s374 = sadd.s32 %s36, %s35
          %s375 = smul.addr %s374, 128
          %s376 = scalar_lea.hbm %s0, %s375
          %s378 = sshll.u32 %s370, 4
          %s379 = int_to_ptr.vmem [resolvable:$true] %s378
          %381 = dma.hbm_to_vmem [thread:$0]  %s376, 128, %s379, %s367
        $region52: #{tpu_custom_call.1} parent=47 // pred_fallthru
          _
      $region48: #{tpu_custom_call.1} parent=5 // pred_fallthru
        _
      %p382 = scmp.le.s32.totalorder 1, %s28
      %p383 = scmp.lt.s32.totalorder %s28, 3
      %p384 = pnand %p382, %p383
      %p385 = pneg %p384
      // Predicated region
      $region53: #{tpu_custom_call.1} parent=5 // pred_check
        _
      $region54: #{tpu_custom_call.1} parent=5 // pred_check_branch
        %387 = sbr.rel (%p384) target = $region56
      $region55: #{tpu_custom_call.1} parent=5 // pred_region
        %s388 = ssub.s32 %s28, 1
        %s389 = sand.u32 %s55, 1
        %s390 = scalar_lea.sflag [#allocation3], %s389
        %s391 = sand.u32 %s55, 1
        %s392 = smul.addr %s391, 8
        %s393 = scalar_lea.vmem [#allocation2], %s392
        // Predicated region
        $region57: #{tpu_custom_call.1} parent=55 // pred_check
          %p394 = pneg %p68
        $region58: #{tpu_custom_call.1} parent=55 // pred_check_branch
          %396 = sbr.rel (%p394) target = $region60
        $region59: #{tpu_custom_call.1} parent=55 // pred_region
          %397 = dma.done %s390, 128
        $region60: #{tpu_custom_call.1} parent=55 // pred_fallthru
          _
        // Predicated region
        $region61: #{tpu_custom_call.1} parent=55 // pred_check
          %p398 = pneg %p131
        $region62: #{tpu_custom_call.1} parent=55 // pred_check_branch
          %400 = sbr.rel (%p398) target = $region64
        $region63: #{tpu_custom_call.1} parent=55 // pred_region
          %401 = dma.done [#allocation6], 2048
        $region64: #{tpu_custom_call.1} parent=55 // pred_fallthru
          _
        // Predicated region
        $region65: #{tpu_custom_call.1} parent=55 // pred_check
          %p402 = pneg %p173
        $region66: #{tpu_custom_call.1} parent=55 // pred_check_branch
          %404 = sbr.rel (%p402) target = $region68
        $region67: #{tpu_custom_call.1} parent=55 // pred_region
          %405 = dma.done [#allocation6], 2048
        $region68: #{tpu_custom_call.1} parent=55 // pred_fallthru
          _
        // Predicated region
        $region69: #{tpu_custom_call.1} parent=55 // pred_check
          %p406 = pneg %p215
        $region70: #{tpu_custom_call.1} parent=55 // pred_check_branch
          %408 = sbr.rel (%p406) target = $region72
        $region71: #{tpu_custom_call.1} parent=55 // pred_region
          %409 = dma.done [#allocation9], 2048
        $region72: #{tpu_custom_call.1} parent=55 // pred_fallthru
          _
        %s410 = sand.u32 %s55, 1
        %s411 = scalar_lea.sflag [#allocation3], %s410
        %s412 = sand.u32 %s55, 1
        %s413 = smul.addr %s412, 8
        %s414 = scalar_lea.vmem [#allocation2], %s413
        %p415 = pneg %p68
        %p416 = pneg %p65
        %p417 = pneg %p89
        %p418 = pneg %p86
        %p419 = pneg %p110
        %p420 = pneg %p107
        %p421 = pneg %p131
        %p422 = pneg %p128
        %p423 = pneg %p152
        %p424 = pneg %p149
        %p425 = pneg %p173
        %p426 = pneg %p170
        %p427 = pneg %p194
        %p428 = pneg %p191
        %p429 = pneg %p215
        %p430 = pneg %p212
        %p431 = pneg %p236
        %p432 = pneg %p233
        %p433 = pneg %p262
        %p434 = pneg %p259
        %s435 = sand.u32 %s249, 1
        %s436 = scalar_lea.sflag [#allocation4], %s435
        %s437 = sand.u32 %s249, 1
        %s438 = scalar_lea.vmem [#allocation10], %s437
        %p439 = pneg %p290
        %p440 = pneg %p287
        %s441 = sand.u32 %s277, 1
        %s442 = scalar_lea.sflag [#allocation12], %s441
        %s443 = sand.u32 %s277, 1
        %s444 = smul.addr %s443, 8
        %s445 = scalar_lea.vmem [#allocation11], %s444
        %v446 = vld [vmem:[%s393] sm:$0xff]
        %447 = vadd.xlane.f32.xlu0 %v446
        %v448 = vpop.xlane.xlu0 %447
        %v449 = vmul.f32 %v448, 0.03125
        %v450 = vmul.f32 %v446, %v446
        %451 = vadd.xlane.f32.xlu0 %v450
        %v452 = vpop.xlane.xlu0 %451
        %v453 = vmul.f32 %v452, 0.03125
        %v454 = vmul.f32 %v449, %v449
        %v455 = vsub.f32 %v453, %v454
        %v456 = vmax.f32 %v455, 0.0
        %v457 = vsub.f32 %v446, %v449
        %v458 = vadd.f32 %v456, 1e-05
        %v459 = vrsqrt.pop %v458
        %v460 = vmul.f32 %v457, %v459
        %v461 = vld [vmem:[%s1] sm:$0x1]
        %v463 = vlaneseq
        %v464 = vshrl.u32 %v463, 7
        %v465 = vsub.s32 0, %v464
        %v466 = vrot.slane %v461, %v465
        %v468 = vmul.f32 %v460, %v466
        %v469 = vld [vmem:[%s2] sm:$0x1]
        %v471 = vlaneseq
        %v472 = vshrl.u32 %v471, 7
        %v473 = vsub.s32 0, %v472
        %v474 = vrot.slane %v469, %v473
        %v476 = vadd.f32 %v468, %v474
        %v477 = vld [vmem:[#allocation5] sm:$0xff]
        %v478 = vld [vmem:[#allocation5 + $0x8] sm:$0xff]
        %v479 = vld [vmem:[#allocation5 + $0x10] sm:$0xff]
        %v480 = vld [vmem:[#allocation5 + $0x18] sm:$0xff]
        %v481 = vld [vmem:[#allocation5 + $0x20] sm:$0xff]
        %v482 = vld [vmem:[#allocation5 + $0x28] sm:$0xff]
        %v483 = vld [vmem:[#allocation5 + $0x30] sm:$0xff]
        %v484 = vld [vmem:[#allocation5 + $0x38] sm:$0xff]
        %v485 = vld [vmem:[#allocation5 + $0x40] sm:$0xff]
        %v486 = vld [vmem:[#allocation5 + $0x48] sm:$0xff]
        %v487 = vld [vmem:[#allocation5 + $0x50] sm:$0xff]
        %v488 = vld [vmem:[#allocation5 + $0x58] sm:$0xff]
        %v489 = vld [vmem:[#allocation5 + $0x60] sm:$0xff]
        %v490 = vld [vmem:[#allocation5 + $0x68] sm:$0xff]
        %v491 = vld [vmem:[#allocation5 + $0x70] sm:$0xff]
        %v492 = vld [vmem:[#allocation5 + $0x78] sm:$0xff]
        %v493 = vld [vmem:[%s4] sm:$0x1]
        %v495 = vlaneseq
        %v496 = vshrl.u32 %v495, 7
        %v497 = vsub.s32 0, %v496
        %v498 = vrot.slane %v493, %v497
        %500 = vmatprep.subr.mxu0 0.0
        %501 = vmatpush1.msra.mxu0 %v477
        %502 = vmatprep.subr.mxu0 0.0
        %503 = vmatpush1.msra.mxu0 %v478
        %504 = vmatprep.subr.mxu0 0.0
        %505 = vmatpush1.msra.mxu0 %v479
        %506 = vmatprep.subr.mxu0 0.0
        %507 = vmatpush1.msra.mxu0 %v480
        %508 = vmatprep.subr.mxu0 0.0
        %509 = vmatpush1.msra.mxu0 %v481
        %510 = vmatprep.subr.mxu0 0.0
        %511 = vmatpush1.msra.mxu0 %v482
        %512 = vmatprep.subr.mxu0 0.0
        %513 = vmatpush1.msra.mxu0 %v483
        %514 = vmatprep.subr.mxu0 0.0
        %515 = vmatpush1.msra.mxu0 %v484
        %516 = vmatprep.subr.mxu0 0.0
        %517 = vmatpush1.msra.mxu0 %v485
        %518 = vmatprep.subr.mxu0 0.0
        %519 = vmatpush1.msra.mxu0 %v486
        %520 = vmatprep.subr.mxu0 0.0
        %521 = vmatpush1.msra.mxu0 %v487
        %522 = vmatprep.subr.mxu0 0.0
        %523 = vmatpush1.msra.mxu0 %v488
        %524 = vmatprep.subr.mxu0 0.0
        %525 = vmatpush1.msra.mxu0 %v489
        %526 = vmatprep.subr.mxu0 0.0
        %527 = vmatpush1.msra.mxu0 %v490
        %528 = vmatprep.subr.mxu0 0.0
        %529 = vmatpush1.msra.mxu0 %v491
        %530 = vmatprep.subr.mxu0 0.0
        %531 = vmatpush1.msra.mxu0 %v492
        %532 = vmatprep.subr.mxu0 0.0
        %533 = vmatpush1.msra.mxu0 0.0
        %534 = vmatprep.subr.mxu0 0.0
        %535 = vmatpush1.msra.mxu0 0.0
        %536 = vmatprep.subr.mxu0 0.0
        %537 = vmatpush1.msra.mxu0 0.0
        %538 = vmatprep.subr.mxu0 0.0
        %539 = vmatpush1.msra.mxu0 0.0
        %540 = vmatprep.subr.mxu0 0.0
        %541 = vmatpush1.msra.mxu0 0.0
        %542 = vmatprep.subr.mxu0 0.0
        %543 = vmatpush1.msra.mxu0 0.0
        %544 = vmatprep.subr.mxu0 0.0
        %545 = vmatpush1.msra.mxu0 0.0
        %546 = vmatprep.subr.mxu0 0.0
        %547 = vmatpush1.msra.mxu0 0.0
        %548 = vmatprep.subr.mxu0 0.0
        %549 = vmatpush1.msra.mxu0 0.0
        %550 = vmatprep.subr.mxu0 0.0
        %551 = vmatpush1.msra.mxu0 0.0
        %552 = vmatprep.subr.mxu0 0.0
        %553 = vmatpush1.msra.mxu0 0.0
        %554 = vmatprep.subr.mxu0 0.0
        %555 = vmatpush1.msra.mxu0 0.0
        %556 = vmatprep.subr.mxu0 0.0
        %557 = vmatpush1.msra.mxu0 0.0
        %558 = vmatprep.subr.mxu0 0.0
        %559 = vmatpush1.msra.mxu0 0.0
        %560 = vmatprep.subr.mxu0 0.0
        %561 = vmatpush1.msra.mxu0 0.0
        %562 = vmatprep.subr.mxu0 0.0
        %563 = vmatpush1.msra.mxu0 0.0
        %564 = vmatprep.mubr.f32.mxu0 0.0
        %565 = vmatmul.mubr.f32.gmra.mrb[0].mxu0 %v476
        %v566 = vpop.f32.mrb[0].mxu0
        %v567 = vadd.f32 %v498, %v566
        %v568 = vpop.f32.mrb[0].mxu0
        %569 = vdwg.mxu0
        %v570 = vmul.f32 %v567, 0.5
        %v571 = vmul.f32 %v567, 0.70710677
        %v572 = verf.f32.pop %v571
        %v573 = vadd.f32 %v572, 1.0
        %v574 = vmul.f32 %v570, %v573
        %v575 = vld [vmem:[#allocation7] sm:$0xff]
        %v576 = vld [vmem:[#allocation7 + $0x8] sm:$0xff]
        %v577 = vld [vmem:[#allocation7 + $0x10] sm:$0xff]
        %v578 = vld [vmem:[#allocation7 + $0x18] sm:$0xff]
        %v579 = vld [vmem:[#allocation7 + $0x20] sm:$0xff]
        %v580 = vld [vmem:[#allocation7 + $0x28] sm:$0xff]
        %v581 = vld [vmem:[#allocation7 + $0x30] sm:$0xff]
        %v582 = vld [vmem:[#allocation7 + $0x38] sm:$0xff]
        %v583 = vld [vmem:[#allocation7 + $0x40] sm:$0xff]
        %v584 = vld [vmem:[#allocation7 + $0x48] sm:$0xff]
        %v585 = vld [vmem:[#allocation7 + $0x50] sm:$0xff]
        %v586 = vld [vmem:[#allocation7 + $0x58] sm:$0xff]
        %v587 = vld [vmem:[#allocation7 + $0x60] sm:$0xff]
        %v588 = vld [vmem:[#allocation7 + $0x68] sm:$0xff]
        %v589 = vld [vmem:[#allocation7 + $0x70] sm:$0xff]
        %v590 = vld [vmem:[#allocation7 + $0x78] sm:$0xff]
        %v591 = vld [vmem:[%s6] sm:$0x1]
        %v593 = vlaneseq
        %v594 = vshrl.u32 %v593, 7
        %v595 = vsub.s32 0, %v594
        %v596 = vrot.slane %v591, %v595
        %598 = vmatprep.subr.mxu0 0.0
        %599 = vmatpush1.msra.mxu0 %v575
        %600 = vmatprep.subr.mxu0 0.0
        %601 = vmatpush1.msra.mxu0 %v576
        %602 = vmatprep.subr.mxu0 0.0
        %603 = vmatpush1.msra.mxu0 %v577
        %604 = vmatprep.subr.mxu0 0.0
        %605 = vmatpush1.msra.mxu0 %v578
        %606 = vmatprep.subr.mxu0 0.0
        %607 = vmatpush1.msra.mxu0 %v579
        %608 = vmatprep.subr.mxu0 0.0
        %609 = vmatpush1.msra.mxu0 %v580
        %610 = vmatprep.subr.mxu0 0.0
        %611 = vmatpush1.msra.mxu0 %v581
        %612 = vmatprep.subr.mxu0 0.0
        %613 = vmatpush1.msra.mxu0 %v582
        %614 = vmatprep.subr.mxu0 0.0
        %615 = vmatpush1.msra.mxu0 %v583
        %616 = vmatprep.subr.mxu0 0.0
        %617 = vmatpush1.msra.mxu0 %v584
        %618 = vmatprep.subr.mxu0 0.0
        %619 = vmatpush1.msra.mxu0 %v585
        %620 = vmatprep.subr.mxu0 0.0
        %621 = vmatpush1.msra.mxu0 %v586
        %622 = vmatprep.subr.mxu0 0.0
        %623 = vmatpush1.msra.mxu0 %v587
        %624 = vmatprep.subr.mxu0 0.0
        %625 = vmatpush1.msra.mxu0 %v588
        %626 = vmatprep.subr.mxu0 0.0
        %627 = vmatpush1.msra.mxu0 %v589
        %628 = vmatprep.subr.mxu0 0.0
        %629 = vmatpush1.msra.mxu0 %v590
        %630 = vmatprep.subr.mxu0 0.0
        %631 = vmatpush1.msra.mxu0 0.0
        %632 = vmatprep.subr.mxu0 0.0
        %633 = vmatpush1.msra.mxu0 0.0
        %634 = vmatprep.subr.mxu0 0.0
        %635 = vmatpush1.msra.mxu0 0.0
        %636 = vmatprep.subr.mxu0 0.0
        %637 = vmatpush1.msra.mxu0 0.0
        %638 = vmatprep.subr.mxu0 0.0
        %639 = vmatpush1.msra.mxu0 0.0
        %640 = vmatprep.subr.mxu0 0.0
        %641 = vmatpush1.msra.mxu0 0.0
        %642 = vmatprep.subr.mxu0 0.0
        %643 = vmatpush1.msra.mxu0 0.0
        %644 = vmatprep.subr.mxu0 0.0
        %645 = vmatpush1.msra.mxu0 0.0
        %646 = vmatprep.subr.mxu0 0.0
        %647 = vmatpush1.msra.mxu0 0.0
        %648 = vmatprep.subr.mxu0 0.0
        %649 = vmatpush1.msra.mxu0 0.0
        %650 = vmatprep.subr.mxu0 0.0
        %651 = vmatpush1.msra.mxu0 0.0
        %652 = vmatprep.subr.mxu0 0.0
        %653 = vmatpush1.msra.mxu0 0.0
        %654 = vmatprep.subr.mxu0 0.0
        %655 = vmatpush1.msra.mxu0 0.0
        %656 = vmatprep.subr.mxu0 0.0
        %657 = vmatpush1.msra.mxu0 0.0
        %658 = vmatprep.subr.mxu0 0.0
        %659 = vmatpush1.msra.mxu0 0.0
        %660 = vmatprep.subr.mxu0 0.0
        %661 = vmatpush1.msra.mxu0 0.0
        %662 = vmatprep.mubr.f32.mxu0 0.0
        %663 = vmatmul.mubr.f32.gmra.mrb[0].mxu0 %v574
        %v664 = vpop.f32.mrb[0].mxu0
        %v665 = vadd.f32 %v596, %v664
        %v666 = vpop.f32.mrb[0].mxu0
        %667 = vdwg.mxu0
        %v668 = vmul.f32 %v665, 0.5
        %v669 = vmul.f32 %v665, 0.70710677
        %v670 = verf.f32.pop %v669
        %v671 = vadd.f32 %v670, 1.0
        %v672 = vmul.f32 %v668, %v671
        %v673 = vld [vmem:[#allocation8] sm:$0xff]
        %v674 = vld [vmem:[#allocation8 + $0x8] sm:$0xff]
        %v675 = vld [vmem:[#allocation8 + $0x10] sm:$0xff]
        %v676 = vld [vmem:[#allocation8 + $0x18] sm:$0xff]
        %v677 = vld [vmem:[#allocation8 + $0x20] sm:$0xff]
        %v678 = vld [vmem:[#allocation8 + $0x28] sm:$0xff]
        %v679 = vld [vmem:[#allocation8 + $0x30] sm:$0xff]
        %v680 = vld [vmem:[#allocation8 + $0x38] sm:$0xff]
        %v681 = vld [vmem:[#allocation8 + $0x40] sm:$0xff]
        %v682 = vld [vmem:[#allocation8 + $0x48] sm:$0xff]
        %v683 = vld [vmem:[#allocation8 + $0x50] sm:$0xff]
        %v684 = vld [vmem:[#allocation8 + $0x58] sm:$0xff]
        %v685 = vld [vmem:[#allocation8 + $0x60] sm:$0xff]
        %v686 = vld [vmem:[#allocation8 + $0x68] sm:$0xff]
        %v687 = vld [vmem:[#allocation8 + $0x70] sm:$0xff]
        %v688 = vld [vmem:[#allocation8 + $0x78] sm:$0xff]
        %v689 = vld [vmem:[%s8] sm:$0x1]
        %v691 = vlaneseq
        %v692 = vshrl.u32 %v691, 7
        %v693 = vsub.s32 0, %v692
        %v694 = vrot.slane %v689, %v693
        %696 = vmatprep.subr.mxu0 0.0
        %697 = vmatpush1.msra.mxu0 %v673
        %698 = vmatprep.subr.mxu0 0.0
        %699 = vmatpush1.msra.mxu0 %v674
        %700 = vmatprep.subr.mxu0 0.0
        %701 = vmatpush1.msra.mxu0 %v675
        %702 = vmatprep.subr.mxu0 0.0
        %703 = vmatpush1.msra.mxu0 %v676
        %704 = vmatprep.subr.mxu0 0.0
        %705 = vmatpush1.msra.mxu0 %v677
        %706 = vmatprep.subr.mxu0 0.0
        %707 = vmatpush1.msra.mxu0 %v678
        %708 = vmatprep.subr.mxu0 0.0
        %709 = vmatpush1.msra.mxu0 %v679
        %710 = vmatprep.subr.mxu0 0.0
        %711 = vmatpush1.msra.mxu0 %v680
        %712 = vmatprep.subr.mxu0 0.0
        %713 = vmatpush1.msra.mxu0 %v681
        %714 = vmatprep.subr.mxu0 0.0
        %715 = vmatpush1.msra.mxu0 %v682
        %716 = vmatprep.subr.mxu0 0.0
        %717 = vmatpush1.msra.mxu0 %v683
        %718 = vmatprep.subr.mxu0 0.0
        %719 = vmatpush1.msra.mxu0 %v684
        %720 = vmatprep.subr.mxu0 0.0
        %721 = vmatpush1.msra.mxu0 %v685
        %722 = vmatprep.subr.mxu0 0.0
        %723 = vmatpush1.msra.mxu0 %v686
        %724 = vmatprep.subr.mxu0 0.0
        %725 = vmatpush1.msra.mxu0 %v687
        %726 = vmatprep.subr.mxu0 0.0
        %727 = vmatpush1.msra.mxu0 %v688
        %728 = vmatprep.subr.mxu0 0.0
        %729 = vmatpush1.msra.mxu0 0.0
        %730 = vmatprep.subr.mxu0 0.0
        %731 = vmatpush1.msra.mxu0 0.0
        %732 = vmatprep.subr.mxu0 0.0
        %733 = vmatpush1.msra.mxu0 0.0
        %734 = vmatprep.subr.mxu0 0.0
        %735 = vmatpush1.msra.mxu0 0.0
        %736 = vmatprep.subr.mxu0 0.0
        %737 = vmatpush1.msra.mxu0 0.0
        %738 = vmatprep.subr.mxu0 0.0
        %739 = vmatpush1.msra.mxu0 0.0
        %740 = vmatprep.subr.mxu0 0.0
        %741 = vmatpush1.msra.mxu0 0.0
        %742 = vmatprep.subr.mxu0 0.0
        %743 = vmatpush1.msra.mxu0 0.0
        %744 = vmatprep.subr.mxu0 0.0
        %745 = vmatpush1.msra.mxu0 0.0
        %746 = vmatprep.subr.mxu0 0.0
        %747 = vmatpush1.msra.mxu0 0.0
        %748 = vmatprep.subr.mxu0 0.0
        %749 = vmatpush1.msra.mxu0 0.0
        %750 = vmatprep.subr.mxu0 0.0
        %751 = vmatpush1.msra.mxu0 0.0
        %752 = vmatprep.subr.mxu0 0.0
        %753 = vmatpush1.msra.mxu0 0.0
        %754 = vmatprep.subr.mxu0 0.0
        %755 = vmatpush1.msra.mxu0 0.0
        %756 = vmatprep.subr.mxu0 0.0
        %757 = vmatpush1.msra.mxu0 0.0
        %758 = vmatprep.subr.mxu0 0.0
        %759 = vmatpush1.msra.mxu0 0.0
        %760 = vmatprep.mubr.f32.mxu0 0.0
        %761 = vmatmul.mubr.f32.gmra.mrb[0].mxu0 %v672
        %v762 = vpop.f32.mrb[0].mxu0
        %v763 = vadd.f32 %v694, %v762
        %v764 = vpop.f32.mrb[0].mxu0
        %765 = vdwg.mxu0
        %766 = vst [vmem:[%s445] sm:$0xff] %v763
        %v767 = vadd.f32 %v665, %v446
        %p768 = scmp.eq.s32.totalorder %s38, 0
        // Predicated region
        $region73: #{tpu_custom_call.1} parent=55 // pred_check
          %p769 = pneg %p768
        $region74: #{tpu_custom_call.1} parent=55 // pred_check_branch
          %771 = sbr.rel (%p769) target = $region76
        $region75: #{tpu_custom_call.1} parent=55 // pred_region
          %772 = vst [vmem:[%s438] sm:$0x1] 0.0
        $region76: #{tpu_custom_call.1} parent=55 // pred_fallthru
          _
        %v773 = vld [vmem:[%s438] sm:$0x1]
        %v774 = vrot.slane %v767, 4
        %v775 = vadd.f32 %v767, %v774
        %v776 = vrot.slane %v775, 2
        %v777 = vadd.f32 %v775, %v776
        %v778 = vrot.slane %v777, 1
        %v779 = vadd.f32 %v777, %v778
        %v780 = vadd.f32 %v773, %v779
        %781 = vst [vmem:[%s438] sm:$0x1] %v780
        // Predicated region
        $region77: #{tpu_custom_call.1} parent=55 // pred_check
          %p782 = pneg %p768
        $region78: #{tpu_custom_call.1} parent=55 // pred_check_branch
          %784 = sbr.rel (%p782) target = $region80
        $region79: #{tpu_custom_call.1} parent=55 // pred_region
          %v785 = vld [vmem:[%s438] sm:$0x1]
          %v786 = vmul.f32 %v785, 0.125
          %787 = vst [vmem:[%s438] sm:$0x1] %v786
        $region80: #{tpu_custom_call.1} parent=55 // pred_fallthru
          _
        %s788 = sand.u32 %s249, 1
        %s789 = scalar_lea.sflag [#allocation4], %s788
        %s790 = sand.u32 %s249, 1
        %s791 = scalar_lea.vmem [#allocation10], %s790
        %s792 = sand.u32 %s277, 1
        %s793 = scalar_lea.sflag [#allocation12], %s792
        %s794 = sand.u32 %s277, 1
        %s795 = smul.addr %s794, 8
        %s796 = scalar_lea.vmem [#allocation11], %s795
        // Predicated region
        $region81: #{tpu_custom_call.1} parent=55 // pred_check
          %p797 = pneg %p259
        $region82: #{tpu_custom_call.1} parent=55 // pred_check_branch
          %799 = sbr.rel (%p797) target = $region84
        $region83: #{tpu_custom_call.1} parent=55 // pred_region
          %s801 = ssub.s32 16, 16
          %802 = vsyncadd %s789, %s801
          %s803 = smul.addr %s37, 16
          %s804 = scalar_lea.hbm %s9, %s803
          %s806 = sshll.u32 %s791, 4
          %s807 = int_to_ptr.vmem [resolvable:$true] %s806
          %809 = dma.vmem_to_hbm [thread:$0]  %s807, 16, %s804, %s789
        $region84: #{tpu_custom_call.1} parent=55 // pred_fallthru
          _
        // Predicated region
        $region85: #{tpu_custom_call.1} parent=55 // pred_check
          %p810 = pneg %p287
        $region86: #{tpu_custom_call.1} parent=55 // pred_check_branch
          %812 = sbr.rel (%p810) target = $region88
        $region87: #{tpu_custom_call.1} parent=55 // pred_region
          %s814 = ssub.s32 128, 128
          %815 = vsyncadd %s793, %s814
          %s816 = sadd.s32 %s38, %s37
          %s817 = smul.addr %s816, 128
          %s818 = scalar_lea.hbm %s10, %s817
          %s820 = sshll.u32 %s796, 4
          %s821 = int_to_ptr.vmem [resolvable:$true] %s820
          %823 = dma.vmem_to_hbm [thread:$0]  %s821, 128, %s818, %s793
        $region88: #{tpu_custom_call.1} parent=55 // pred_fallthru
          _
      $region56: #{tpu_custom_call.1} parent=5 // pred_fallthru
        _
      %p824 = scmp.le.s32.totalorder 2, %s28
      // Predicated region
      $region89: #{tpu_custom_call.1} parent=5 // pred_check
        %p825 = pneg %p824
      $region90: #{tpu_custom_call.1} parent=5 // pred_check_branch
        %827 = sbr.rel (%p825) target = $region92
      $region91: #{tpu_custom_call.1} parent=5 // pred_region
        %s828 = ssub.s32 %s28, 2
        // Predicated region
        $region93: #{tpu_custom_call.1} parent=91 // pred_check
          %p829 = pneg %p265
        $region94: #{tpu_custom_call.1} parent=91 // pred_check_branch
          %831 = sbr.rel (%p829) target = $region96
        $region95: #{tpu_custom_call.1} parent=91 // pred_region
          %s832 = sand.u32 %s250, 1
          %s833 = scalar_lea.sflag [#allocation4], %s832
          %s834 = sand.u32 %s250, 1
          %s835 = scalar_lea.vmem [#allocation10], %s834
          %836 = dma.done %s833, 16
        $region96: #{tpu_custom_call.1} parent=91 // pred_fallthru
          _
        // Predicated region
        $region97: #{tpu_custom_call.1} parent=91 // pred_check
          %p837 = pneg %p293
        $region98: #{tpu_custom_call.1} parent=91 // pred_check_branch
          %839 = sbr.rel (%p837) target = $region100
        $region99: #{tpu_custom_call.1} parent=91 // pred_region
          %s840 = sand.u32 %s278, 1
          %s841 = scalar_lea.sflag [#allocation12], %s840
          %s842 = sand.u32 %s278, 1
          %s843 = smul.addr %s842, 8
          %s844 = scalar_lea.vmem [#allocation11], %s843
          %845 = dma.done %s841, 128
        $region100: #{tpu_custom_call.1} parent=91 // pred_fallthru
          _
      $region92: #{tpu_custom_call.1} parent=5 // pred_fallthru
        _
    $region6: #{tpu_custom_call.1} parent=1 // loop_footer
      %s32 = sadd.s32 1, %s28
    $region7: #{tpu_custom_call.1} parent=1 // loop_footer_branch
      %27 = sbr.rel target = $region3
    $region8: #{tpu_custom_call.1} parent=1 // loop_exit
      _
    %846 = vsyncpa [#allocation3], 1
    %s847 = scalar_lea.sflag [#allocation3], 1
    %848 = vsyncpa %s847, 1
    %849 = vsyncpa [#allocation6], 1
    %850 = vsyncpa [#allocation9], 1
    %851 = vsyncpa [#allocation4], 1
    %s852 = scalar_lea.sflag [#allocation4], 1
    %853 = vsyncpa %s852, 1
    %854 = vsyncpa [#allocation12], 1
    %s855 = scalar_lea.sflag [#allocation12], 1
    %856 = vsyncpa %s855, 1

</llo_original>
